<compile_context>
chip_gen: v5e
topology: v5e:2x2
jax: 0.10.0
libtpu: 0.0.40
codegen_flags: <defaults>
</compile_context>

<pallas_src>
import functools

import jax
import jax.numpy as jnp
from jax.experimental import pallas as pl
from jax.experimental.pallas import tpu as pltpu

BN_EPS = 1e-5
_VMEM_LIMIT = 48 * 1024 * 1024  # safe on v7x (64 MiB VMEM), ample on v5e/v6e


def _round_up(x, m):
    return ((x + m - 1) // m) * m


# ---------------- Pass 1 kernels: ReLU + conv-as-matmul + channel stats ------

def _stats_only_kernel(x_ref, w_ref, sum_ref, sqsum_ref):
    # Used when the conv intermediate is cheap to recompute (1x1 conv path).
    j = pl.program_id(1)

    @pl.when(j == 0)
    def _():
        sum_ref[...] = jnp.zeros_like(sum_ref)
        sqsum_ref[...] = jnp.zeros_like(sqsum_ref)

    x = jnp.maximum(x_ref[...], 0.0)                                  # (K, tm)  VPU
    y = jnp.dot(w_ref[...], x, preferred_element_type=jnp.float32)    # (C_out, tm) MXU
    sum_ref[...] += jnp.sum(y, axis=1, keepdims=True)                 # (C_out, 1) XLU
    sqsum_ref[...] += jnp.sum(y * y, axis=1, keepdims=True)


def _conv_stats_kernel(x_ref, w_ref, y_ref, sum_ref, sqsum_ref):
    # Used for larger K (e.g. 3x3): also materializes y (lane-dense store).
    j = pl.program_id(1)

    @pl.when(j == 0)
    def _():
        sum_ref[...] = jnp.zeros_like(sum_ref)
        sqsum_ref[...] = jnp.zeros_like(sqsum_ref)

    x = jnp.maximum(x_ref[...], 0.0)                                  # (K, tm)
    y = jnp.dot(w_ref[...], x, preferred_element_type=jnp.float32)    # (C_out, tm)
    y_ref[...] = y                                                    # tm lanes: dense vst
    sum_ref[...] += jnp.sum(y, axis=1, keepdims=True)
    sqsum_ref[...] += jnp.sum(y * y, axis=1, keepdims=True)


# ---------------- Pass 2 kernels ----------------------------------------------

def _fused_conv_bn_kernel(x_ref, wf_ref, shift_ref, o_ref):
    # Recompute conv with BN-folded weights:  out = (scale*W) @ relu(x) + shift
    x = jnp.maximum(x_ref[...], 0.0)
    o_ref[...] = (jnp.dot(wf_ref[...], x, preferred_element_type=jnp.float32)
                  + shift_ref[...])


def _bn_apply_kernel(y_ref, scale_ref, shift_ref, o_ref):
    o_ref[...] = y_ref[...] * scale_ref[...] + shift_ref[...]


# ---------------- Wrapper -----------------------------------------------------

@functools.partial(jax.jit, static_argnames=("stride", "padding", "tile_m"))
def relu_conv_bn(x, w, gamma, beta, *, stride=1, padding=0, tile_m=4096):
    """x: (N, C_in, H, W) f32.  w: (C_out, C_in, kh, kw).  gamma/beta: (C_out,)."""
    N, C_in, H, W = x.shape
    C_out, C_in_w, kh, kw = w.shape
    assert C_in_w == C_in

    Ho = (H + 2 * padding - kh) // stride + 1
    Wo = (W + 2 * padding - kw) // stride + 1
    P = Ho * Wo
    K = C_in * kh * kw
    M_true = N * P

    # ---- layout glue: channel-major im2col, so kernel output IS NCHW --------
    # ReLU(0)=0, so zero spatial / lane padding commutes with the in-kernel ReLU.
    xp = jnp.pad(x, ((0, 0), (0, 0), (padding, padding), (padding, padding))) \
        if padding else x
    if kh == 1 and kw == 1:
        patches = xp[:, :, ::stride, ::stride].reshape(N, C_in, P)
    else:
        # TODO(synk): XLA-side im2col inflates the input kh*kw x in HBM; an
        # in-kernel windowed accumulation would read x only once.
        cols = [xp[:, :, i:i + stride * Ho:stride, j:j + stride * Wo:stride]
                for i in range(kh) for j in range(kw)]
        patches = jnp.stack(cols, axis=2).reshape(N, K, P)   # (N, C_in*kh*kw, Ho*Wo)

    tm = min(_round_up(tile_m, 128), _round_up(P, 128))      # lane dim, mult of 128
    P_pad = _round_up(P, tm)
    if P_pad != P:
        patches = jnp.pad(patches, ((0, 0), (0, 0), (0, P_pad - P)))
    grid = (N, P_pad // tm)

    w2d = w.reshape(C_out, K).astype(jnp.float32)

    x_spec = pl.BlockSpec((None, K, tm), lambda n, j: (n, 0, j))
    w_spec = pl.BlockSpec((C_out, K), lambda n, j: (0, 0))
    y_spec = pl.BlockSpec((None, C_out, tm), lambda n, j: (n, 0, j))
    stat_spec = pl.BlockSpec((None, C_out, 1), lambda n, j: (n, 0, 0))
    vec_spec = pl.BlockSpec((C_out, 1), lambda n, j: (0, 0))

    fuse_recompute = (K <= 2 * C_out)   # 1x1 convs: cheaper to redo the matmul

    # ---- pass 1: ReLU + conv, per-channel sum / sum-of-squares --------------
    if fuse_recompute:
        sums, sqsums = pl.pallas_call(
            _stats_only_kernel,
            out_shape=(jax.ShapeDtypeStruct((N, C_out, 1), jnp.float32),
                       jax.ShapeDtypeStruct((N, C_out, 1), jnp.float32)),
            grid=grid,
            in_specs=[x_spec, w_spec],
            out_specs=(stat_spec, stat_spec),
            compiler_params=pltpu.CompilerParams(
                dimension_semantics=("parallel", "arbitrary"),
                vmem_limit_bytes=_VMEM_LIMIT),
        )(patches, w2d)
        y3 = None
    else:
        y3, sums, sqsums = pl.pallas_call(
            _conv_stats_kernel,
            out_shape=(jax.ShapeDtypeStruct((N, C_out, P_pad), jnp.float32),
                       jax.ShapeDtypeStruct((N, C_out, 1), jnp.float32),
                       jax.ShapeDtypeStruct((N, C_out, 1), jnp.float32)),
            grid=grid,
            in_specs=[x_spec, w_spec],
            out_specs=(y_spec, stat_spec, stat_spec),
            compiler_params=pltpu.CompilerParams(
                dimension_semantics=("parallel", "arbitrary"),
                vmem_limit_bytes=_VMEM_LIMIT),
        )(patches, w2d)

    # ---- tiny per-channel finalize (C_out scalars) in plain JAX -------------
    ch_sum = jnp.sum(sums, axis=0).reshape(C_out)
    ch_sq = jnp.sum(sqsums, axis=0).reshape(C_out)
    mean = ch_sum / M_true
    var = jnp.maximum(ch_sq / M_true - mean * mean, 0.0)   # biased var (PyTorch BN)
    scale = gamma * jax.lax.rsqrt(var + BN_EPS)
    shift = (beta - mean * scale).reshape(C_out, 1)
    # TODO(synk): running_mean / running_var buffers are not tracked (forward
    # output in training mode depends only on batch stats, which are computed).

    # ---- pass 2: normalized output, fully parallel, lane-dense NCHW blocks --
    if fuse_recompute:
        w_fold = w2d * scale.reshape(C_out, 1)
        out3 = pl.pallas_call(
            _fused_conv_bn_kernel,
            out_shape=jax.ShapeDtypeStruct((N, C_out, P_pad), jnp.float32),
            grid=grid,
            in_specs=[x_spec, w_spec, vec_spec],
            out_specs=y_spec,
            compiler_params=pltpu.CompilerParams(
                dimension_semantics=("parallel", "parallel"),
                vmem_limit_bytes=_VMEM_LIMIT),
        )(patches, w_fold, shift)
    else:
        out3 = pl.pallas_call(
            _bn_apply_kernel,
            out_shape=jax.ShapeDtypeStruct((N, C_out, P_pad), jnp.float32),
            grid=grid,
            in_specs=[y_spec, vec_spec, vec_spec],
            out_specs=y_spec,
            input_output_aliases={0: 0},          # reuse the y buffer
            compiler_params=pltpu.CompilerParams(
                dimension_semantics=("parallel", "parallel"),
                vmem_limit_bytes=_VMEM_LIMIT),
        )(y3, scale.reshape(C_out, 1), shift)

    out = out3[:, :, :P] if P_pad != P else out3
    return out.reshape(N, C_out, Ho, Wo)        # already NCHW: no transpose


# ---------------- Reference ----------------------------------------------------

def _reference(x, w, gamma, beta, stride, padding):
    xr = jnp.maximum(x, 0.0)
    y = jax.lax.conv_general_dilated(
        xr, w, window_strides=(stride, stride),
        padding=[(padding, padding), (padding, padding)],
        dimension_numbers=("NCHW", "OIHW", "NCHW"))
    mean = jnp.mean(y, axis=(0, 2, 3), keepdims=True)
    var = jnp.mean((y - mean) ** 2, axis=(0, 2, 3), keepdims=True)
    yhat = (y - mean) * jax.lax.rsqrt(var + BN_EPS)
    return yhat * gamma.reshape(1, -1, 1, 1) + beta.reshape(1, -1, 1, 1)


if __name__ == "__main__":
    key = jax.random.PRNGKey(0)
    kx, kw1, kw3 = jax.random.split(key, 3)

    N, C_in, H, W, C_out = 2, 4, 16, 16, 8
    x = jax.random.normal(kx, (N, C_in, H, W), dtype=jnp.float32)
    # BatchNorm affine params at PyTorch init (weight=1, bias=0).
    gamma = jnp.ones((C_out,), dtype=jnp.float32)
    beta = jnp.zeros((C_out,), dtype=jnp.float32)

    # Canonical DARTS ReLUConvBN: 1x1, stride 1, padding 0 (fused recompute path).
    w1 = jax.random.normal(kw1, (C_out, C_in, 1, 1), dtype=jnp.float32) * 0.1
    out1 = relu_conv_bn(x, w1, gamma, beta, stride=1, padding=0)
    jax.block_until_ready(out1)
    assert out1.shape == (N, C_out, H, W), out1.shape
    ref1 = _reference(x, w1, gamma, beta, 1, 0)
    assert jnp.allclose(out1, ref1, atol=1e-3, rtol=1e-3), float(
        jnp.max(jnp.abs(out1 - ref1)))

    # 3x3, stride 1, padding 1 (materialize path; small tile to exercise the
    # multi-tile stats accumulation and the aliased pass-2 apply kernel).
    w3 = jax.random.normal(kw3, (C_out, C_in, 3, 3), dtype=jnp.float32) * 0.1
    out3 = relu_conv_bn(x, w3, gamma, beta, stride=1, padding=1, tile_m=128)
    jax.block_until_ready(out3)
    assert out3.shape == (N, C_out, H, W), out3.shape
    ref3 = _reference(x, w3, gamma, beta, 1, 1)
    assert jnp.allclose(out3, ref3, atol=1e-3, rtol=1e-3), float(
        jnp.max(jnp.abs(out3 - ref3)))

    print("KERNEL_OK")
</pallas_src>

<mosaic_0001>
module attributes {stable_mosaic.version = 11 : i64} {
  func.func @_stats_only_kernel(%arg0: i32, %arg1: i32, %arg2: memref<1x4x256xf32, #tpu.memory_space<vmem>>, %arg3: memref<8x4xf32, #tpu.memory_space<vmem>>, %arg4: memref<1x8x1xf32, #tpu.memory_space<vmem>>, %arg5: memref<1x8x1xf32, #tpu.memory_space<vmem>>) attributes {dimension_semantics = [#tpu.dimension_semantics<parallel>, #tpu.dimension_semantics<arbitrary>], iteration_bounds = array<i64: 2, 1>, scalar_prefetch = 0 : i64, scratch_operands = 0 : i64, tpu.core_type = #tpu.core_type<tc>, window_params = [{transform_indices = @transform_0, window_bounds = array<i64: 1, 4, 256>}, {pipeline_mode = #tpu.pipeline_mode<synchronous>, transform_indices = @transform_1, window_bounds = array<i64: 8, 4>}, {transform_indices = @transform_2, window_bounds = array<i64: 1, 8, 1>}, {transform_indices = @transform_3, window_bounds = array<i64: 1, 8, 1>}]} {
    %c0_i32 = arith.constant 0 : i32
    %0 = arith.cmpi eq, %arg1, %c0_i32 : i32
    %1 = arith.extui %0 : i1 to i32
    %c0_i32_0 = arith.constant 0 : i32
    %2 = arith.cmpi ne, %1, %c0_i32_0 : i32
    scf.if %2 {
      %cst_20 = arith.constant 0.000000e+00 : f32
      %26 = vector.broadcast %cst_20 : f32 to vector<8x1xf32>
      %c0_21 = arith.constant 0 : index
      %c0_22 = arith.constant 0 : index
      %c0_23 = arith.constant 0 : index
      %27 = vector.load %arg4[%c0_21, %c0_22, %c0_23] : memref<1x8x1xf32, #tpu.memory_space<vmem>>, vector<1x8x1xf32>
      %28 = vector.shape_cast %27 : vector<1x8x1xf32> to vector<8x1xf32>
      %29 = vector.shape_cast %26 : vector<8x1xf32> to vector<1x8x1xf32>
      tpu.vector_store %arg4[%c0_21, %c0_22, %c0_23], %29 {strides = array<i32>} : memref<1x8x1xf32, #tpu.memory_space<vmem>>, vector<1x8x1xf32>,
      %cst_24 = arith.constant 0.000000e+00 : f32
      %30 = vector.broadcast %cst_24 : f32 to vector<8x1xf32>
      %c0_25 = arith.constant 0 : index
      %c0_26 = arith.constant 0 : index
      %c0_27 = arith.constant 0 : index
      %31 = vector.load %arg5[%c0_25, %c0_26, %c0_27] : memref<1x8x1xf32, #tpu.memory_space<vmem>>, vector<1x8x1xf32>
      %32 = vector.shape_cast %31 : vector<1x8x1xf32> to vector<8x1xf32>
      %33 = vector.shape_cast %30 : vector<8x1xf32> to vector<1x8x1xf32>
      tpu.vector_store %arg5[%c0_25, %c0_26, %c0_27], %33 {strides = array<i32>} : memref<1x8x1xf32, #tpu.memory_space<vmem>>, vector<1x8x1xf32>,
    } else {
    }
    %c0 = arith.constant 0 : index
    %c0_1 = arith.constant 0 : index
    %c0_2 = arith.constant 0 : index
    %3 = vector.load %arg2[%c0, %c0_1, %c0_2] : memref<1x4x256xf32, #tpu.memory_space<vmem>>, vector<1x4x256xf32>
    %4 = vector.shape_cast %3 : vector<1x4x256xf32> to vector<4x256xf32>
    %cst = arith.constant 0.000000e+00 : f32
    %5 = vector.broadcast %cst : f32 to vector<4x256xf32>
    %6 = arith.maximumf %4, %5 : vector<4x256xf32>
    %c0_3 = arith.constant 0 : index
    %c0_4 = arith.constant 0 : index
    %7 = vector.load %arg3[%c0_3, %c0_4] : memref<8x4xf32, #tpu.memory_space<vmem>>, vector<8x4xf32>
    %cst_5 = arith.constant dense<0.000000e+00> : vector<8x256xf32>
    %8 = tpu.matmul %7, %6, %cst_5 {dimension_numbers = #tpu.dot_dimension_numbers<[1], [0], [0], [1], [0, 0, 1, 1], [], []>} : vector<8x4xf32>, vector<4x256xf32>, vector<8x256xf32> -> vector<8x256xf32>
    %c0_6 = arith.constant 0 : index
    %c0_7 = arith.constant 0 : index
    %c0_8 = arith.constant 0 : index
    %9 = vector.load %arg4[%c0_6, %c0_7, %c0_8] : memref<1x8x1xf32, #tpu.memory_space<vmem>>, vector<1x8x1xf32>
    %10 = vector.shape_cast %9 : vector<1x8x1xf32> to vector<8x1xf32>
    %cst_9 = arith.constant dense<0.000000e+00> : vector<8xf32>
    %11 = vector.multi_reduction <add>, %8, %cst_9 [1] : vector<8x256xf32> to vector<8xf32>
    %12 = vector.shape_cast %11 : vector<8xf32> to vector<8x1xf32>
    %13 = arith.addf %10, %12 : vector<8x1xf32>
    %c0_10 = arith.constant 0 : index
    %c0_11 = arith.constant 0 : index
    %c0_12 = arith.constant 0 : index
    %14 = vector.load %arg4[%c0_10, %c0_11, %c0_12] : memref<1x8x1xf32, #tpu.memory_space<vmem>>, vector<1x8x1xf32>
    %15 = vector.shape_cast %14 : vector<1x8x1xf32> to vector<8x1xf32>
    %16 = vector.shape_cast %13 : vector<8x1xf32> to vector<1x8x1xf32>
    tpu.vector_store %arg4[%c0_10, %c0_11, %c0_12], %16 {strides = array<i32>} : memref<1x8x1xf32, #tpu.memory_space<vmem>>, vector<1x8x1xf32>,
    %c0_13 = arith.constant 0 : index
    %c0_14 = arith.constant 0 : index
    %c0_15 = arith.constant 0 : index
    %17 = vector.load %arg5[%c0_13, %c0_14, %c0_15] : memref<1x8x1xf32, #tpu.memory_space<vmem>>, vector<1x8x1xf32>
    %18 = vector.shape_cast %17 : vector<1x8x1xf32> to vector<8x1xf32>
    %19 = arith.mulf %8, %8 : vector<8x256xf32>
    %cst_16 = arith.constant dense<0.000000e+00> : vector<8xf32>
    %20 = vector.multi_reduction <add>, %19, %cst_16 [1] : vector<8x256xf32> to vector<8xf32>
    %21 = vector.shape_cast %20 : vector<8xf32> to vector<8x1xf32>
    %22 = arith.addf %18, %21 : vector<8x1xf32>
    %c0_17 = arith.constant 0 : index
    %c0_18 = arith.constant 0 : index
    %c0_19 = arith.constant 0 : index
    %23 = vector.load %arg5[%c0_17, %c0_18, %c0_19] : memref<1x8x1xf32, #tpu.memory_space<vmem>>, vector<1x8x1xf32>
    %24 = vector.shape_cast %23 : vector<1x8x1xf32> to vector<8x1xf32>
    %25 = vector.shape_cast %22 : vector<8x1xf32> to vector<1x8x1xf32>
    tpu.vector_store %arg5[%c0_17, %c0_18, %c0_19], %25 {strides = array<i32>} : memref<1x8x1xf32, #tpu.memory_space<vmem>>, vector<1x8x1xf32>,
    return
  }
  func.func @transform_0(%arg0: i32, %arg1: i32) -> (i32, i32, i32) {
    %c0_i32 = arith.constant 0 : i32
    %c0_i32_0 = arith.constant 0 : i32
    return %arg0, %c0_i32, %arg1 : i32, i32, i32
  }
  func.func @transform_1(%arg0: i32, %arg1: i32) -> (i32, i32) {
    %c0_i32 = arith.constant 0 : i32
    %c0_i32_0 = arith.constant 0 : i32
    %c0_i32_1 = arith.constant 0 : i32
    return %c0_i32, %c0_i32_0 : i32, i32
  }
  func.func @transform_2(%arg0: i32, %arg1: i32) -> (i32, i32, i32) {
    %c0_i32 = arith.constant 0 : i32
    %c0_i32_0 = arith.constant 0 : i32
    %c0_i32_1 = arith.constant 0 : i32
    return %arg0, %c0_i32, %c0_i32_0 : i32, i32, i32
  }
  func.func @transform_3(%arg0: i32, %arg1: i32) -> (i32, i32, i32) {
    %c0_i32 = arith.constant 0 : i32
    %c0_i32_0 = arith.constant 0 : i32
    %c0_i32_1 = arith.constant 0 : i32
    return %arg0, %c0_i32, %c0_i32_0 : i32, i32, i32
  }
}

module attributes {stable_mosaic.version = 11 : i64} {
  func.func @_fused_conv_bn_kernel(%arg0: i32, %arg1: i32, %arg2: memref<1x4x256xf32, #tpu.memory_space<vmem>>, %arg3: memref<8x4xf32, #tpu.memory_space<vmem>>, %arg4: memref<8x1xf32, #tpu.memory_space<vmem>>, %arg5: memref<1x8x256xf32, #tpu.memory_space<vmem>>) attributes {dimension_semantics = [#tpu.dimension_semantics<parallel>, #tpu.dimension_semantics<parallel>], iteration_bounds = array<i64: 2, 1>, scalar_prefetch = 0 : i64, scratch_operands = 0 : i64, tpu.core_type = #tpu.core_type<tc>, window_params = [{transform_indices = @transform_0, window_bounds = array<i64: 1, 4, 256>}, {pipeline_mode = #tpu.pipeline_mode<synchronous>, transform_indices = @transform_1, window_bounds = array<i64: 8, 4>}, {pipeline_mode = #tpu.pipeline_mode<synchronous>, transform_indices = @transform_2, window_bounds = array<i64: 8, 1>}, {transform_indices = @transform_3, window_bounds = array<i64: 1, 8, 256>}]} {
    %c0 = arith.constant 0 : index
    %c0_0 = arith.constant 0 : index
    %c0_1 = arith.constant 0 : index
    %0 = vector.load %arg2[%c0, %c0_0, %c0_1] : memref<1x4x256xf32, #tpu.memory_space<vmem>>, vector<1x4x256xf32>
    %1 = vector.shape_cast %0 : vector<1x4x256xf32> to vector<4x256xf32>
    %cst = arith.constant 0.000000e+00 : f32
    %2 = vector.broadcast %cst : f32 to vector<4x256xf32>
    %3 = arith.maximumf %1, %2 : vector<4x256xf32>
    %c0_2 = arith.constant 0 : index
    %c0_3 = arith.constant 0 : index
    %4 = vector.load %arg3[%c0_2, %c0_3] : memref<8x4xf32, #tpu.memory_space<vmem>>, vector<8x4xf32>
    %cst_4 = arith.constant dense<0.000000e+00> : vector<8x256xf32>
    %5 = tpu.matmul %4, %3, %cst_4 {dimension_numbers = #tpu.dot_dimension_numbers<[1], [0], [0], [1], [0, 0, 1, 1], [], []>} : vector<8x4xf32>, vector<4x256xf32>, vector<8x256xf32> -> vector<8x256xf32>
    %c0_5 = arith.constant 0 : index
    %c0_6 = arith.constant 0 : index
    %6 = vector.load %arg4[%c0_5, %c0_6] : memref<8x1xf32, #tpu.memory_space<vmem>>, vector<8x1xf32>
    %7 = vector.broadcast %6 : vector<8x1xf32> to vector<8x256xf32>
    %8 = arith.addf %5, %7 : vector<8x256xf32>
    %c0_7 = arith.constant 0 : index
    %c0_8 = arith.constant 0 : index
    %c0_9 = arith.constant 0 : index
    %9 = vector.load %arg5[%c0_7, %c0_8, %c0_9] : memref<1x8x256xf32, #tpu.memory_space<vmem>>, vector<1x8x256xf32>
    %10 = vector.shape_cast %9 : vector<1x8x256xf32> to vector<8x256xf32>
    %11 = vector.shape_cast %8 : vector<8x256xf32> to vector<1x8x256xf32>
    tpu.vector_store %arg5[%c0_7, %c0_8, %c0_9], %11 {strides = array<i32>} : memref<1x8x256xf32, #tpu.memory_space<vmem>>, vector<1x8x256xf32>,
    return
  }
  func.func @transform_0(%arg0: i32, %arg1: i32) -> (i32, i32, i32) {
    %c0_i32 = arith.constant 0 : i32
    %c0_i32_0 = arith.constant 0 : i32
    return %arg0, %c0_i32, %arg1 : i32, i32, i32
  }
  func.func @transform_1(%arg0: i32, %arg1: i32) -> (i32, i32) {
    %c0_i32 = arith.constant 0 : i32
    %c0_i32_0 = arith.constant 0 : i32
    %c0_i32_1 = arith.constant 0 : i32
    return %c0_i32, %c0_i32_0 : i32, i32
  }
  func.func @transform_2(%arg0: i32, %arg1: i32) -> (i32, i32) {
    %c0_i32 = arith.constant 0 : i32
    %c0_i32_0 = arith.constant 0 : i32
    %c0_i32_1 = arith.constant 0 : i32
    return %c0_i32, %c0_i32_0 : i32, i32
  }
  func.func @transform_3(%arg0: i32, %arg1: i32) -> (i32, i32, i32) {
    %c0_i32 = arith.constant 0 : i32
    %c0_i32_0 = arith.constant 0 : i32
    return %arg0, %c0_i32, %arg1 : i32, i32, i32
  }
}

</mosaic_0001>

<llo_original>
// kernel: relu_conv_bn.2
$region0: #{relu_conv_bn.2}
  #allocation0 [shape = 'u32[]', space=smem, size = 0x4, offset = 0x4, fixed_abs, tag = 'smem constant byte address 0x4 - core index']
  #allocation1 [shape = 'u32[72,128]{1,0:T(1,128)}', space=vmem, size = 0x9000, scoped, tag = 'internal scratch']
  %s0 = inlined_call_operand.vmem [shape: f32[2,4,256], index: 0, kind: input, shape index: {}]
  %s1 = inlined_call_operand.vmem [shape: f32[8,4], index: 1, kind: input, shape index: {}]
  %s2 = inlined_call_operand.vmem [shape: f32[2,8,1], index: 2, kind: output, shape index: {0}]
  %s3 = inlined_call_operand.vmem [shape: f32[2,8,1], index: 3, kind: output, shape index: {1}]
  %4 = xla_tuple %s2, %s3
  %s5 = sld [smem:[#allocation0]]
  $region53: #{relu_conv_bn.2} parent=0
    _
  %s7 = ssub.s32 1, %s5
  %s8 = scalar_select 0, %s7, %s5
  loop: start=0, step=1, limit=4
  $region2: #{relu_conv_bn.2} parent=0 // loop_pre_header
    _
  $region3: #{relu_conv_bn.2} parent=0 // loop_header
    %s10 = sphi 0, %s14
    %p11 = scmp.ge.s32.totalorder %s10, 4
    %s17 = sphi 0, %s29
    %s18 = sphi 0, %s25
    %s19 = sphi 0, %s17
    %s20 = sphi 0, %s18
    %s21 = sphi 0, %s19
    %s22 = sphi 0, %s20
    %s34 = sphi 0, %s36
    %s37 = sphi 0, %s34
    %s38 = sphi 0, %s37
    %s54 = sphi 0, %s38
    %s58 = sphi 0, %s58
    %s60 = sphi 0, %s58
    %s61 = sphi 0, %s60
    %s75 = sphi 0, %s61
    %s81 = sphi 0, %s83
    %s84 = sphi 0, %s81
    %s85 = sphi 0, %s84
    %s101 = sphi 0, %s85
    %s107 = sphi 0, %s109
    %s110 = sphi 0, %s107
    %s111 = sphi 0, %s110
    %s127 = sphi 0, %s111
  $region4: #{relu_conv_bn.2} parent=0 // loop_header_branch
    %13 = sbr.rel (%p11) target = $region8
  $region5: #{relu_conv_bn.2} parent=0 // loop_body
    %s15 = ssub.s32 %s10, 1
    %s16 = ssub.s32 %s10, 2
    %s23 = sadd.s32 1, %s18
    %p24 = scmp.ge.s32.totalorder %s23, 1
    %s25 = scalar_select %p24, 0, %s23
    %s26 = sadd.s32 1, %s17
    %s27 = scalar_select %p24, %s26, %s17
    %p28 = scmp.ge.s32.totalorder %s27, 2
    %s29 = scalar_select %p28, 0, %s27
    %s30 = ssub.s32 %s17, %s29
    %s31 = ssub.s32 %s18, %s25
    %s32 = sor.u32 %s30, %s31
    %p33 = scmp.eq.s32.totalorder %s32, 0
    %s35 = sadd.s32 %s34, 1
    %s36 = scalar_select %p33, %s34, %s35
    %p39 = pneg %p33
    %p40 = scmp.eq.s32.totalorder %s10, 1
    %p41 = por %p39, %p40
    %p42 = scmp.ne.s32.totalorder %s34, %s37
    %p43 = scmp.eq.s32.totalorder %s10, 0
    %p44 = por %p42, %p43
    %p45 = scmp.ne.s32.totalorder %s34, %s37
    %p46 = scmp.eq.s32.totalorder %s15, 1
    %p47 = por %p45, %p46
    %p48 = scmp.ne.s32.totalorder %s37, %s38
    %p49 = scmp.eq.s32.totalorder %s15, 0
    %p50 = por %p48, %p49
    %p51 = scmp.ne.s32.totalorder %s37, %s38
    %p52 = scmp.eq.s32.totalorder %s16, 1
    %p53 = por %p51, %p52
    %p55 = scmp.ne.s32.totalorder %s38, %s54
    %p56 = scmp.eq.s32.totalorder %s16, 0
    %p57 = por %p55, %p56
    %s59 = sadd.s32 %s58, 1
    %p62 = scmp.eq.s32.totalorder %s10, 1
    %p63 = scmp.ne.s32.totalorder %s58, %s60
    %p64 = scmp.eq.s32.totalorder %s10, 0
    %p65 = por %p63, %p64
    %p66 = scmp.ne.s32.totalorder %s58, %s60
    %p67 = scmp.eq.s32.totalorder %s15, 1
    %p68 = por %p66, %p67
    %p69 = scmp.ne.s32.totalorder %s60, %s61
    %p70 = scmp.eq.s32.totalorder %s15, 0
    %p71 = por %p69, %p70
    %p72 = scmp.ne.s32.totalorder %s60, %s61
    %p73 = scmp.eq.s32.totalorder %s16, 1
    %p74 = por %p72, %p73
    %p76 = scmp.ne.s32.totalorder %s61, %s75
    %p77 = scmp.eq.s32.totalorder %s16, 0
    %p78 = por %p76, %p77
    %s79 = ssub.s32 %s17, %s29
    %p80 = scmp.eq.s32.totalorder %s79, 0
    %s82 = sadd.s32 %s81, 1
    %s83 = scalar_select %p80, %s81, %s82
    %p86 = pneg %p80
    %p87 = scmp.eq.s32.totalorder %s10, 1
    %p88 = por %p86, %p87
    %p89 = scmp.ne.s32.totalorder %s81, %s84
    %p90 = scmp.eq.s32.totalorder %s10, 0
    %p91 = por %p89, %p90
    %p92 = scmp.ne.s32.totalorder %s81, %s84
    %p93 = scmp.eq.s32.totalorder %s15, 1
    %p94 = por %p92, %p93
    %p95 = scmp.ne.s32.totalorder %s84, %s85
    %p96 = scmp.eq.s32.totalorder %s15, 0
    %p97 = por %p95, %p96
    %p98 = scmp.ne.s32.totalorder %s84, %s85
    %p99 = scmp.eq.s32.totalorder %s16, 1
    %p100 = por %p98, %p99
    %p102 = scmp.ne.s32.totalorder %s85, %s101
    %p103 = scmp.eq.s32.totalorder %s16, 0
    %p104 = por %p102, %p103
    %s105 = ssub.s32 %s17, %s29
    %p106 = scmp.eq.s32.totalorder %s105, 0
    %s108 = sadd.s32 %s107, 1
    %s109 = scalar_select %p106, %s107, %s108
    %p112 = pneg %p106
    %p113 = scmp.eq.s32.totalorder %s10, 1
    %p114 = por %p112, %p113
    %p115 = scmp.ne.s32.totalorder %s107, %s110
    %p116 = scmp.eq.s32.totalorder %s10, 0
    %p117 = por %p115, %p116
    %p118 = scmp.ne.s32.totalorder %s107, %s110
    %p119 = scmp.eq.s32.totalorder %s15, 1
    %p120 = por %p118, %p119
    %p121 = scmp.ne.s32.totalorder %s110, %s111
    %p122 = scmp.eq.s32.totalorder %s15, 0
    %p123 = por %p121, %p122
    %p124 = scmp.ne.s32.totalorder %s110, %s111
    %p125 = scmp.eq.s32.totalorder %s16, 1
    %p126 = por %p124, %p125
    %p128 = scmp.ne.s32.totalorder %s111, %s127
    %p129 = scmp.eq.s32.totalorder %s16, 0
    %p130 = por %p128, %p129
    %p131 = scmp.le.s32.totalorder 1, %s10
    %p132 = scmp.lt.s32.totalorder %s10, 3
    %p133 = pnand %p131, %p132
    %p134 = pneg %p133
    // Predicated region
    $region9: #{relu_conv_bn.2} parent=5 // pred_check
      _
    $region10: #{relu_conv_bn.2} parent=5 // pred_check_branch
      %136 = sbr.rel (%p133) target = $region12
    $region11: #{relu_conv_bn.2} parent=5 // pred_region
      %s137 = ssub.s32 %s10, 1
      // Predicated region
      $region13: #{relu_conv_bn.2} parent=11 // pred_check
        %p138 = pneg %p71
      $region14: #{relu_conv_bn.2} parent=11 // pred_check_branch
        %140 = sbr.rel (%p138) target = $region16
      $region15: #{relu_conv_bn.2} parent=11 // pred_region
        _
      $region16: #{relu_conv_bn.2} parent=11 // pred_fallthru
        _
    $region12: #{relu_conv_bn.2} parent=5 // pred_fallthru
      _
    %p141 = scmp.lt.s32.totalorder %s10, 2
    // Predicated region
    $region17: #{relu_conv_bn.2} parent=5 // pred_check
      %p142 = pneg %p141
    $region18: #{relu_conv_bn.2} parent=5 // pred_check_branch
      %144 = sbr.rel (%p142) target = $region20
    $region19: #{relu_conv_bn.2} parent=5 // pred_region
      // Predicated region
      $region21: #{relu_conv_bn.2} parent=19 // pred_check
        %p145 = pneg %p44
      $region22: #{relu_conv_bn.2} parent=19 // pred_check_branch
        %147 = sbr.rel (%p145) target = $region24
      $region23: #{relu_conv_bn.2} parent=19 // pred_region
        %s148 = smul.u32 2, %s18
        %p149 = scmp.lt.s32.totalorder %s17, 1
        %s150 = scalar_select %p149, %s17, 1
        %p151 = scmp.lt.s32.totalorder %s148, 1
        %s152 = scalar_select %p151, %s148, 1
        %s153 = smul.addr %s150, 2
        %s154 = sadd.s32 %s152, %s153
        %s155 = smul.addr %s154, 4
        %s156 = scalar_lea.vmem %s0, %s155
        %s157 = smul.u32 2, %s18
      $region24: #{relu_conv_bn.2} parent=19 // pred_fallthru
        _
    $region20: #{relu_conv_bn.2} parent=5 // pred_fallthru
      _
    %p158 = scmp.le.s32.totalorder 1, %s10
    %p159 = scmp.lt.s32.totalorder %s10, 3
    %p160 = pnand %p158, %p159
    %p161 = pneg %p160
    // Predicated region
    $region25: #{relu_conv_bn.2} parent=5 // pred_check
      _
    $region26: #{relu_conv_bn.2} parent=5 // pred_check_branch
      %163 = sbr.rel (%p160) target = $region28
    $region27: #{relu_conv_bn.2} parent=5 // pred_region
      %s164 = ssub.s32 %s10, 1
      %s165 = smul.u32 2, %s20
      %p166 = scmp.lt.s32.totalorder %s19, 1
      %s167 = scalar_select %p166, %s19, 1
      %p168 = scmp.lt.s32.totalorder %s165, 1
      %s169 = scalar_select %p168, %s165, 1
      %s170 = smul.addr %s167, 2
      %s171 = sadd.s32 %s169, %s170
      %s172 = smul.addr %s171, 4
      %s173 = scalar_lea.vmem %s0, %s172
      %p174 = pneg %p50
      %p175 = pneg %p47
      %p176 = pneg %p71
      %p177 = pneg %p68
      %p178 = pneg %p97
      %p179 = pneg %p94
      %p180 = scmp.lt.s32.totalorder %s19, 1
      %s181 = scalar_select %p180, %s19, 1
      %s182 = smul.addr %s181, 8
      %s183 = scalar_lea.vmem %s2, %s182
      %p184 = pneg %p123
      %p185 = pneg %p120
      %p186 = scmp.lt.s32.totalorder %s19, 1
      %s187 = scalar_select %p186, %s19, 1
      %s188 = smul.addr %s187, 8
      %s189 = scalar_lea.vmem %s3, %s188
      %s190 = smul.u32 2, %s20
      %p191 = scmp.lt.s32.totalorder %s19, 1
      %s192 = scalar_select %p191, %s19, 1
      %p193 = scmp.lt.s32.totalorder %s190, 1
      %s194 = scalar_select %p193, %s190, 1
      %s195 = smul.addr %s192, 2
      %s196 = sadd.s32 %s194, %s195
      %s197 = smul.addr %s196, 4
      %s198 = scalar_lea.vmem %s0, %s197
      %s199 = smul.u32 2, %s20
      %p200 = scmp.lt.s32.totalorder %s19, 1
      %s201 = scalar_select %p200, %s19, 1
      %s202 = smul.addr %s201, 8
      %s203 = scalar_lea.vmem %s2, %s202
      %p204 = scmp.lt.s32.totalorder %s19, 1
      %s205 = scalar_select %p204, %s19, 1
      %s206 = smul.addr %s205, 8
      %s207 = scalar_lea.vmem %s3, %s206
      %p208 = scmp.eq.s32.totalorder %s20, 0
      // Predicated region
      $region29: #{relu_conv_bn.2} parent=27 // pred_check
        %p209 = pneg %p208
      $region30: #{relu_conv_bn.2} parent=27 // pred_check_branch
        %211 = sbr.rel (%p209) target = $region32
      $region31: #{relu_conv_bn.2} parent=27 // pred_region
        %vm212 = vcmask 7168
        %213 = vst.msk [vmem:[%s203] sm:$0xff] %vm212, 0.0
        %214 = vst.msk [vmem:[%s207] sm:$0xff] %vm212, 0.0
      $region32: #{relu_conv_bn.2} parent=27 // pred_fallthru
        _
      %v215 = vld [vmem:[%s198] sm:$0xff]
      %v216 = vmax.f32 %v215, 0.0
      %v217 = vld [vmem:[%s1] sm:$0xff]
      %219 = vst [vmem:[#allocation1] ss:$2 sm:$0xff] %v216
      %v220 = vld.sshfl [vmem:[#allocation1] sm:$0xff pattern:$0x75316420]
      %v221 = vld.sshfl [vmem:[#allocation1 + $0x8] sm:$0xff pattern:$0x75316420]
      %vm222 = vcmask 31744
      %v224 = vsel %vm222, %v217, 0
      %vm226 = vcmask 1043456
      %v227 = vsel %vm226, %v220, 0
      %v229 = vsel %vm226, %v221, 0
      %231 = vmatpush.msra.mxu0 0.0
      %232 = vmatpush.msra.mxu0 0.0
      %233 = vmatpush.msra.mxu0 0.0
      %234 = vmatpush.msra.mxu0 0.0
      %235 = vmatpush.msra.mxu0 0.0
      %236 = vmatpush.msra.mxu0 0.0
      %237 = vmatpush.msra.mxu0 0.0
      %238 = vmatpush.msra.mxu0 0.0
      %239 = vmatpush.msra.mxu0 0.0
      %240 = vmatpush.msra.mxu0 0.0
      %241 = vmatpush.msra.mxu0 0.0
      %242 = vmatpush.msra.mxu0 0.0
      %243 = vmatpush.msra.mxu0 0.0
      %244 = vmatpush.msra.mxu0 0.0
      %245 = vmatpush.msra.mxu0 0.0
      %246 = vmatpush.msra.mxu0 %v227
      %247 = vmatmul.f32.gmra.mxu0 %v224
      %v248 = vpop.f32.mrf.mxu0
      %v249 = vadd.f32 0.0, %v248
      %250 = vdwg.mxu0
      %251 = vmatpush.msra.mxu0 0.0
      %252 = vmatpush.msra.mxu0 0.0
      %253 = vmatpush.msra.mxu0 0.0
      %254 = vmatpush.msra.mxu0 0.0
      %255 = vmatpush.msra.mxu0 0.0
      %256 = vmatpush.msra.mxu0 0.0
      %257 = vmatpush.msra.mxu0 0.0
      %258 = vmatpush.msra.mxu0 0.0
      %259 = vmatpush.msra.mxu0 0.0
      %260 = vmatpush.msra.mxu0 0.0
      %261 = vmatpush.msra.mxu0 0.0
      %262 = vmatpush.msra.mxu0 0.0
      %263 = vmatpush.msra.mxu0 0.0
      %264 = vmatpush.msra.mxu0 0.0
      %265 = vmatpush.msra.mxu0 0.0
      %266 = vmatpush.msra.mxu0 %v229
      %267 = vmatmul.f32.gmra.mxu0 %v224
      %v268 = vpop.f32.mrf.mxu0
      %v269 = vadd.f32 0.0, %v268
      %270 = vdwg.mxu0
      %v271 = vld [vmem:[%s203] sm:$0xff]
      %v272 = vadd.f32 %v249, %v269
      %273 = vadd.xlane.f32.xlu0 %v272
      %v274 = vpop.xlane.xlu0 %273
      %v275 = vadd.f32 %v271, %v274
      %vm276 = vcmask 7168
      %277 = vst.msk [vmem:[%s203] sm:$0xff] %vm276, %v275
      %v278 = vld [vmem:[%s207] sm:$0xff]
      %v279 = vmul.f32 %v249, %v249
      %v280 = vmul.f32 %v269, %v269
      %v281 = vadd.f32 %v279, %v280
      %282 = vadd.xlane.f32.xlu0 %v281
      %v283 = vpop.xlane.xlu0 %282
      %v284 = vadd.f32 %v278, %v283
      %285 = vst.msk [vmem:[%s207] sm:$0xff] %vm276, %v284
      %p286 = scmp.lt.s32.totalorder %s19, 1
      %s287 = scalar_select %p286, %s19, 1
      %s288 = smul.addr %s287, 8
      %s289 = scalar_lea.vmem %s2, %s288
      %p290 = scmp.lt.s32.totalorder %s19, 1
      %s291 = scalar_select %p290, %s19, 1
      %s292 = smul.addr %s291, 8
      %s293 = scalar_lea.vmem %s3, %s292
      // Predicated region
      $region33: #{relu_conv_bn.2} parent=27 // pred_check
        %p294 = pneg %p94
      $region34: #{relu_conv_bn.2} parent=27 // pred_check_branch
        %296 = sbr.rel (%p294) target = $region36
      $region35: #{relu_conv_bn.2} parent=27 // pred_region
        _
      $region36: #{relu_conv_bn.2} parent=27 // pred_fallthru
        _
      // Predicated region
      $region37: #{relu_conv_bn.2} parent=27 // pred_check
        %p297 = pneg %p120
      $region38: #{relu_conv_bn.2} parent=27 // pred_check_branch
        %299 = sbr.rel (%p297) target = $region40
      $region39: #{relu_conv_bn.2} parent=27 // pred_region
        _
      $region40: #{relu_conv_bn.2} parent=27 // pred_fallthru
        _
    $region28: #{relu_conv_bn.2} parent=5 // pred_fallthru
      _
    %p300 = scmp.le.s32.totalorder 2, %s10
    // Predicated region
    $region41: #{relu_conv_bn.2} parent=5 // pred_check
      %p301 = pneg %p300
    $region42: #{relu_conv_bn.2} parent=5 // pred_check_branch
      %303 = sbr.rel (%p301) target = $region44
    $region43: #{relu_conv_bn.2} parent=5 // pred_region
      %s304 = ssub.s32 %s10, 2
      // Predicated region
      $region45: #{relu_conv_bn.2} parent=43 // pred_check
        %p305 = pneg %p100
      $region46: #{relu_conv_bn.2} parent=43 // pred_check_branch
        %307 = sbr.rel (%p305) target = $region48
      $region47: #{relu_conv_bn.2} parent=43 // pred_region
        %p308 = scmp.lt.s32.totalorder %s21, 1
        %s309 = scalar_select %p308, %s21, 1
        %s310 = smul.addr %s309, 8
        %s311 = scalar_lea.vmem %s2, %s310
      $region48: #{relu_conv_bn.2} parent=43 // pred_fallthru
        _
      // Predicated region
      $region49: #{relu_conv_bn.2} parent=43 // pred_check
        %p312 = pneg %p126
      $region50: #{relu_conv_bn.2} parent=43 // pred_check_branch
        %314 = sbr.rel (%p312) target = $region52
      $region51: #{relu_conv_bn.2} parent=43 // pred_region
        %p315 = scmp.lt.s32.totalorder %s21, 1
        %s316 = scalar_select %p315, %s21, 1
        %s317 = smul.addr %s316, 8
        %s318 = scalar_lea.vmem %s3, %s317
      $region52: #{relu_conv_bn.2} parent=43 // pred_fallthru
        _
    $region44: #{relu_conv_bn.2} parent=5 // pred_fallthru
      _
  $region6: #{relu_conv_bn.2} parent=0 // loop_footer
    %s14 = sadd.s32 1, %s10
  $region7: #{relu_conv_bn.2} parent=0 // loop_footer_branch
    %9 = sbr.rel target = $region3
  $region8: #{relu_conv_bn.2} parent=0 // loop_exit
    _

// kernel: relu_conv_bn.3
$region0: #{relu_conv_bn.3}
  #allocation0 [shape = 'u32[]', space=smem, size = 0x4, offset = 0x4, fixed_abs, tag = 'smem constant byte address 0x4 - core index']
  #allocation1 [shape = 'u32[72,128]{1,0:T(1,128)}', space=vmem, size = 0x9000, scoped, tag = 'internal scratch']
  %s0 = inlined_call_operand.vmem [shape: f32[2,4,256], index: 0, kind: input, shape index: {}]
  %s1 = inlined_call_operand.vmem [shape: f32[8,4], index: 1, kind: input, shape index: {}]
  %s2 = inlined_call_operand.vmem [shape: f32[8,1], index: 2, kind: input, shape index: {}]
  %s3 = inlined_call_operand.vmem [shape: f32[2,8,256], index: 3, kind: output, shape index: {}]
  %s4 = sld [smem:[#allocation0]]
  $region45: #{relu_conv_bn.3} parent=0
    _
  %s6 = ssub.s32 1, %s4
  %s7 = scalar_select 0, %s6, %s4
  loop: start=0, step=1, limit=4
  $region2: #{relu_conv_bn.3} parent=0 // loop_pre_header
    _
  $region3: #{relu_conv_bn.3} parent=0 // loop_header
    %s9 = sphi 0, %s13
    %p10 = scmp.ge.s32.totalorder %s9, 4
    %s16 = sphi 0, %s28
    %s17 = sphi 0, %s24
    %s18 = sphi 0, %s16
    %s19 = sphi 0, %s17
    %s20 = sphi 0, %s18
    %s21 = sphi 0, %s19
    %s33 = sphi 0, %s35
    %s36 = sphi 0, %s33
    %s37 = sphi 0, %s36
    %s53 = sphi 0, %s37
    %s57 = sphi 0, %s57
    %s59 = sphi 0, %s57
    %s60 = sphi 0, %s59
    %s74 = sphi 0, %s60
    %s78 = sphi 0, %s78
    %s80 = sphi 0, %s78
    %s81 = sphi 0, %s80
    %s95 = sphi 0, %s81
    %s103 = sphi 0, %s105
    %s106 = sphi 0, %s103
    %s107 = sphi 0, %s106
    %s123 = sphi 0, %s107
  $region4: #{relu_conv_bn.3} parent=0 // loop_header_branch
    %12 = sbr.rel (%p10) target = $region8
  $region5: #{relu_conv_bn.3} parent=0 // loop_body
    %s14 = ssub.s32 %s9, 1
    %s15 = ssub.s32 %s9, 2
    %s22 = sadd.s32 1, %s17
    %p23 = scmp.ge.s32.totalorder %s22, 1
    %s24 = scalar_select %p23, 0, %s22
    %s25 = sadd.s32 1, %s16
    %s26 = scalar_select %p23, %s25, %s16
    %p27 = scmp.ge.s32.totalorder %s26, 2
    %s28 = scalar_select %p27, 0, %s26
    %s29 = ssub.s32 %s16, %s28
    %s30 = ssub.s32 %s17, %s24
    %s31 = sor.u32 %s29, %s30
    %p32 = scmp.eq.s32.totalorder %s31, 0
    %s34 = sadd.s32 %s33, 1
    %s35 = scalar_select %p32, %s33, %s34
    %p38 = pneg %p32
    %p39 = scmp.eq.s32.totalorder %s9, 1
    %p40 = por %p38, %p39
    %p41 = scmp.ne.s32.totalorder %s33, %s36
    %p42 = scmp.eq.s32.totalorder %s9, 0
    %p43 = por %p41, %p42
    %p44 = scmp.ne.s32.totalorder %s33, %s36
    %p45 = scmp.eq.s32.totalorder %s14, 1
    %p46 = por %p44, %p45
    %p47 = scmp.ne.s32.totalorder %s36, %s37
    %p48 = scmp.eq.s32.totalorder %s14, 0
    %p49 = por %p47, %p48
    %p50 = scmp.ne.s32.totalorder %s36, %s37
    %p51 = scmp.eq.s32.totalorder %s15, 1
    %p52 = por %p50, %p51
    %p54 = scmp.ne.s32.totalorder %s37, %s53
    %p55 = scmp.eq.s32.totalorder %s15, 0
    %p56 = por %p54, %p55
    %s58 = sadd.s32 %s57, 1
    %p61 = scmp.eq.s32.totalorder %s9, 1
    %p62 = scmp.ne.s32.totalorder %s57, %s59
    %p63 = scmp.eq.s32.totalorder %s9, 0
    %p64 = por %p62, %p63
    %p65 = scmp.ne.s32.totalorder %s57, %s59
    %p66 = scmp.eq.s32.totalorder %s14, 1
    %p67 = por %p65, %p66
    %p68 = scmp.ne.s32.totalorder %s59, %s60
    %p69 = scmp.eq.s32.totalorder %s14, 0
    %p70 = por %p68, %p69
    %p71 = scmp.ne.s32.totalorder %s59, %s60
    %p72 = scmp.eq.s32.totalorder %s15, 1
    %p73 = por %p71, %p72
    %p75 = scmp.ne.s32.totalorder %s60, %s74
    %p76 = scmp.eq.s32.totalorder %s15, 0
    %p77 = por %p75, %p76
    %s79 = sadd.s32 %s78, 1
    %p82 = scmp.eq.s32.totalorder %s9, 1
    %p83 = scmp.ne.s32.totalorder %s78, %s80
    %p84 = scmp.eq.s32.totalorder %s9, 0
    %p85 = por %p83, %p84
    %p86 = scmp.ne.s32.totalorder %s78, %s80
    %p87 = scmp.eq.s32.totalorder %s14, 1
    %p88 = por %p86, %p87
    %p89 = scmp.ne.s32.totalorder %s80, %s81
    %p90 = scmp.eq.s32.totalorder %s14, 0
    %p91 = por %p89, %p90
    %p92 = scmp.ne.s32.totalorder %s80, %s81
    %p93 = scmp.eq.s32.totalorder %s15, 1
    %p94 = por %p92, %p93
    %p96 = scmp.ne.s32.totalorder %s81, %s95
    %p97 = scmp.eq.s32.totalorder %s15, 0
    %p98 = por %p96, %p97
    %s99 = ssub.s32 %s16, %s28
    %s100 = ssub.s32 %s17, %s24
    %s101 = sor.u32 %s99, %s100
    %p102 = scmp.eq.s32.totalorder %s101, 0
    %s104 = sadd.s32 %s103, 1
    %s105 = scalar_select %p102, %s103, %s104
    %p108 = pneg %p102
    %p109 = scmp.eq.s32.totalorder %s9, 1
    %p110 = por %p108, %p109
    %p111 = scmp.ne.s32.totalorder %s103, %s106
    %p112 = scmp.eq.s32.totalorder %s9, 0
    %p113 = por %p111, %p112
    %p114 = scmp.ne.s32.totalorder %s103, %s106
    %p115 = scmp.eq.s32.totalorder %s14, 1
    %p116 = por %p114, %p115
    %p117 = scmp.ne.s32.totalorder %s106, %s107
    %p118 = scmp.eq.s32.totalorder %s14, 0
    %p119 = por %p117, %p118
    %p120 = scmp.ne.s32.totalorder %s106, %s107
    %p121 = scmp.eq.s32.totalorder %s15, 1
    %p122 = por %p120, %p121
    %p124 = scmp.ne.s32.totalorder %s107, %s123
    %p125 = scmp.eq.s32.totalorder %s15, 0
    %p126 = por %p124, %p125
    %p127 = scmp.le.s32.totalorder 1, %s9
    %p128 = scmp.lt.s32.totalorder %s9, 3
    %p129 = pnand %p127, %p128
    %p130 = pneg %p129
    // Predicated region
    $region9: #{relu_conv_bn.3} parent=5 // pred_check
      _
    $region10: #{relu_conv_bn.3} parent=5 // pred_check_branch
      %132 = sbr.rel (%p129) target = $region12
    $region11: #{relu_conv_bn.3} parent=5 // pred_region
      %s133 = ssub.s32 %s9, 1
      // Predicated region
      $region13: #{relu_conv_bn.3} parent=11 // pred_check
        %p134 = pneg %p70
      $region14: #{relu_conv_bn.3} parent=11 // pred_check_branch
        %136 = sbr.rel (%p134) target = $region16
      $region15: #{relu_conv_bn.3} parent=11 // pred_region
        _
      $region16: #{relu_conv_bn.3} parent=11 // pred_fallthru
        _
      // Predicated region
      $region17: #{relu_conv_bn.3} parent=11 // pred_check
        %p137 = pneg %p91
      $region18: #{relu_conv_bn.3} parent=11 // pred_check_branch
        %139 = sbr.rel (%p137) target = $region20
      $region19: #{relu_conv_bn.3} parent=11 // pred_region
        _
      $region20: #{relu_conv_bn.3} parent=11 // pred_fallthru
        _
    $region12: #{relu_conv_bn.3} parent=5 // pred_fallthru
      _
    %p140 = scmp.lt.s32.totalorder %s9, 2
    // Predicated region
    $region21: #{relu_conv_bn.3} parent=5 // pred_check
      %p141 = pneg %p140
    $region22: #{relu_conv_bn.3} parent=5 // pred_check_branch
      %143 = sbr.rel (%p141) target = $region24
    $region23: #{relu_conv_bn.3} parent=5 // pred_region
      // Predicated region
      $region25: #{relu_conv_bn.3} parent=23 // pred_check
        %p144 = pneg %p43
      $region26: #{relu_conv_bn.3} parent=23 // pred_check_branch
        %146 = sbr.rel (%p144) target = $region28
      $region27: #{relu_conv_bn.3} parent=23 // pred_region
        %s147 = smul.u32 2, %s17
        %p148 = scmp.lt.s32.totalorder %s16, 1
        %s149 = scalar_select %p148, %s16, 1
        %p150 = scmp.lt.s32.totalorder %s147, 1
        %s151 = scalar_select %p150, %s147, 1
        %s152 = smul.addr %s149, 2
        %s153 = sadd.s32 %s151, %s152
        %s154 = smul.addr %s153, 4
        %s155 = scalar_lea.vmem %s0, %s154
        %s156 = smul.u32 2, %s17
      $region28: #{relu_conv_bn.3} parent=23 // pred_fallthru
        _
    $region24: #{relu_conv_bn.3} parent=5 // pred_fallthru
      _
    %p157 = scmp.le.s32.totalorder 1, %s9
    %p158 = scmp.lt.s32.totalorder %s9, 3
    %p159 = pnand %p157, %p158
    %p160 = pneg %p159
    // Predicated region
    $region29: #{relu_conv_bn.3} parent=5 // pred_check
      _
    $region30: #{relu_conv_bn.3} parent=5 // pred_check_branch
      %162 = sbr.rel (%p159) target = $region32
    $region31: #{relu_conv_bn.3} parent=5 // pred_region
      %s163 = ssub.s32 %s9, 1
      %s164 = smul.u32 2, %s19
      %p165 = scmp.lt.s32.totalorder %s18, 1
      %s166 = scalar_select %p165, %s18, 1
      %p167 = scmp.lt.s32.totalorder %s164, 1
      %s168 = scalar_select %p167, %s164, 1
      %s169 = smul.addr %s166, 2
      %s170 = sadd.s32 %s168, %s169
      %s171 = smul.addr %s170, 4
      %s172 = scalar_lea.vmem %s0, %s171
      %p173 = pneg %p49
      %p174 = pneg %p46
      %p175 = pneg %p70
      %p176 = pneg %p67
      %p177 = pneg %p91
      %p178 = pneg %p88
      %p179 = pneg %p119
      %p180 = pneg %p116
      %s181 = smul.u32 2, %s19
      %p182 = scmp.lt.s32.totalorder %s18, 1
      %s183 = scalar_select %p182, %s18, 1
      %p184 = scmp.lt.s32.totalorder %s181, 1
      %s185 = scalar_select %p184, %s181, 1
      %s186 = smul.addr %s183, 2
      %s187 = sadd.s32 %s185, %s186
      %s188 = smul.addr %s187, 8
      %s189 = scalar_lea.vmem %s3, %s188
      %s190 = smul.u32 2, %s19
      %p191 = scmp.lt.s32.totalorder %s18, 1
      %s192 = scalar_select %p191, %s18, 1
      %p193 = scmp.lt.s32.totalorder %s190, 1
      %s194 = scalar_select %p193, %s190, 1
      %s195 = smul.addr %s192, 2
      %s196 = sadd.s32 %s194, %s195
      %s197 = smul.addr %s196, 4
      %s198 = scalar_lea.vmem %s0, %s197
      %s199 = smul.u32 2, %s19
      %s200 = smul.u32 2, %s19
      %p201 = scmp.lt.s32.totalorder %s18, 1
      %s202 = scalar_select %p201, %s18, 1
      %p203 = scmp.lt.s32.totalorder %s200, 1
      %s204 = scalar_select %p203, %s200, 1
      %s205 = smul.addr %s202, 2
      %s206 = sadd.s32 %s204, %s205
      %s207 = smul.addr %s206, 8
      %s208 = scalar_lea.vmem %s3, %s207
      %s209 = smul.u32 2, %s19
      %v210 = vld [vmem:[%s198] sm:$0xff]
      %v211 = vmax.f32 %v210, 0.0
      %v212 = vld [vmem:[%s1] sm:$0xff]
      %v213 = vld [vmem:[%s2] sm:$0xff]
      %215 = vset.pattern.permute.xlu0 0
      %216 = vperm.xlu0 %215, %v213
      %v217 = vpop.permute.xlu0 %216
      %220 = vst [vmem:[#allocation1] ss:$2 sm:$0xff] %v211
      %v221 = vld.sshfl [vmem:[#allocation1] sm:$0xff pattern:$0x75316420]
      %v222 = vld.sshfl [vmem:[#allocation1 + $0x8] sm:$0xff pattern:$0x75316420]
      %vm223 = vcmask 31744
      %v225 = vsel %vm223, %v212, 0
      %vm227 = vcmask 1043456
      %v228 = vsel %vm227, %v221, 0
      %v230 = vsel %vm227, %v222, 0
      %232 = vmatpush.msra.mxu0 0.0
      %233 = vmatpush.msra.mxu0 0.0
      %234 = vmatpush.msra.mxu0 0.0
      %235 = vmatpush.msra.mxu0 0.0
      %236 = vmatpush.msra.mxu0 0.0
      %237 = vmatpush.msra.mxu0 0.0
      %238 = vmatpush.msra.mxu0 0.0
      %239 = vmatpush.msra.mxu0 0.0
      %240 = vmatpush.msra.mxu0 0.0
      %241 = vmatpush.msra.mxu0 0.0
      %242 = vmatpush.msra.mxu0 0.0
      %243 = vmatpush.msra.mxu0 0.0
      %244 = vmatpush.msra.mxu0 0.0
      %245 = vmatpush.msra.mxu0 0.0
      %246 = vmatpush.msra.mxu0 0.0
      %247 = vmatpush.msra.mxu0 %v228
      %248 = vmatmul.f32.gmra.mxu0 %v225
      %v249 = vpop.f32.mrf.mxu0
      %v250 = vadd.f32 %v217, %v249
      %251 = vdwg.mxu0
      %252 = vmatpush.msra.mxu0 0.0
      %253 = vmatpush.msra.mxu0 0.0
      %254 = vmatpush.msra.mxu0 0.0
      %255 = vmatpush.msra.mxu0 0.0
      %256 = vmatpush.msra.mxu0 0.0
      %257 = vmatpush.msra.mxu0 0.0
      %258 = vmatpush.msra.mxu0 0.0
      %259 = vmatpush.msra.mxu0 0.0
      %260 = vmatpush.msra.mxu0 0.0
      %261 = vmatpush.msra.mxu0 0.0
      %262 = vmatpush.msra.mxu0 0.0
      %263 = vmatpush.msra.mxu0 0.0
      %264 = vmatpush.msra.mxu0 0.0
      %265 = vmatpush.msra.mxu0 0.0
      %266 = vmatpush.msra.mxu0 0.0
      %267 = vmatpush.msra.mxu0 %v230
      %268 = vmatmul.f32.gmra.mxu0 %v225
      %v269 = vpop.f32.mrf.mxu0
      %v270 = vadd.f32 %v217, %v269
      %271 = vdwg.mxu0
      %272 = vst [vmem:[%s208] sm:$0xff] %v250
      %273 = vst [vmem:[%s208 + $0x8] sm:$0xff] %v270
      %s274 = smul.u32 2, %s19
      %p275 = scmp.lt.s32.totalorder %s18, 1
      %s276 = scalar_select %p275, %s18, 1
      %p277 = scmp.lt.s32.totalorder %s274, 1
      %s278 = scalar_select %p277, %s274, 1
      %s279 = smul.addr %s276, 2
      %s280 = sadd.s32 %s278, %s279
      %s281 = smul.addr %s280, 8
      %s282 = scalar_lea.vmem %s3, %s281
      // Predicated region
      $region33: #{relu_conv_bn.3} parent=31 // pred_check
        %p283 = pneg %p116
      $region34: #{relu_conv_bn.3} parent=31 // pred_check_branch
        %285 = sbr.rel (%p283) target = $region36
      $region35: #{relu_conv_bn.3} parent=31 // pred_region
        %s286 = smul.u32 2, %s19
      $region36: #{relu_conv_bn.3} parent=31 // pred_fallthru
        _
    $region32: #{relu_conv_bn.3} parent=5 // pred_fallthru
      _
    %p287 = scmp.le.s32.totalorder 2, %s9
    // Predicated region
    $region37: #{relu_conv_bn.3} parent=5 // pred_check
      %p288 = pneg %p287
    $region38: #{relu_conv_bn.3} parent=5 // pred_check_branch
      %290 = sbr.rel (%p288) target = $region40
    $region39: #{relu_conv_bn.3} parent=5 // pred_region
      %s291 = ssub.s32 %s9, 2
      // Predicated region
      $region41: #{relu_conv_bn.3} parent=39 // pred_check
        %p292 = pneg %p122
      $region42: #{relu_conv_bn.3} parent=39 // pred_check_branch
        %294 = sbr.rel (%p292) target = $region44
      $region43: #{relu_conv_bn.3} parent=39 // pred_region
        %s295 = smul.u32 2, %s21
        %p296 = scmp.lt.s32.totalorder %s20, 1
        %s297 = scalar_select %p296, %s20, 1
        %p298 = scmp.lt.s32.totalorder %s295, 1
        %s299 = scalar_select %p298, %s295, 1
        %s300 = smul.addr %s297, 2
        %s301 = sadd.s32 %s299, %s300
        %s302 = smul.addr %s301, 8
        %s303 = scalar_lea.vmem %s3, %s302
      $region44: #{relu_conv_bn.3} parent=39 // pred_fallthru
        _
    $region40: #{relu_conv_bn.3} parent=5 // pred_fallthru
      _
  $region6: #{relu_conv_bn.3} parent=0 // loop_footer
    %s13 = sadd.s32 1, %s9
  $region7: #{relu_conv_bn.3} parent=0 // loop_footer_branch
    %8 = sbr.rel target = $region3
  $region8: #{relu_conv_bn.3} parent=0 // loop_exit
    _

</llo_original>
